<compile_context>
chip_gen: v6e
topology: v6e:2x2x1
jax: 0.10.0
libtpu: 0.0.40
codegen_flags: <defaults>
</compile_context>

<pallas_src>
import functools

import jax
import jax.numpy as jnp
from jax import lax
from jax.experimental import pallas as pl
from jax.experimental.pallas import tpu as pltpu


# ----------------------------------------------------------------------------
# Kernel
# ----------------------------------------------------------------------------
def _svm_kernel(x_ref, w1_ref, scalars_ref, o_ref, acc_ref, *, k_valid):
    # x_ref:       (tb, tk)  flattened-input tile
    # w1_ref:      (1, tk)   255 * layer.weight slice (scale folded in wrapper)
    # scalars_ref: (5,) SMEM f32: [b1, w2[0,0], w2[1,0], b2[0], b2[1]]
    # o_ref:       (tb, 2)   softmax output tile (written at last K step)
    # acc_ref:     (tb, 1)   f32 logit accumulator (VMEM scratch)
    k = pl.program_id(1)

    @pl.when(k == 0)
    def _init():
        acc_ref[...] = jnp.zeros_like(acc_ref)

    # layer(255*x): VPU multiply + lane reduce. Single output column -> MXU is
    # rightly skipped (kernel is HBM-bandwidth bound). The product is expected
    # to fuse into the reduction; vmem_limit_bytes budgets a temporary anyway.
    tk = x_ref.shape[1]
    prod = x_ref[...] * w1_ref[...]
    if k_valid % tk != 0:
        # Ragged last K block: zero contributions from out-of-range columns
        # (static Python check, so non-ragged K adds no per-element work).
        col = k * tk + lax.broadcasted_iota(jnp.int32, prod.shape, 1)
        prod = jnp.where(col < k_valid, prod, 0.0)
    acc_ref[...] += jnp.sum(prod, axis=-1, keepdims=True)

    @pl.when(k == pl.num_programs(1) - 1)
    def _finalize():
        s = acc_ref[...] + scalars_ref[0]                           # (tb, 1)
        # layer2 (1 -> 2 outputs) built from SMEM scalars via a column select.
        col2 = lax.broadcasted_iota(jnp.int32, o_ref.shape, 1)      # (tb, 2)
        w2v = jnp.where(col2 == 0, scalars_ref[1], scalars_ref[2])
        b2v = jnp.where(col2 == 0, scalars_ref[3], scalars_ref[4])
        z = s * w2v + b2v                                           # (tb, 2)
        # softmax over the last dim (F.softmax default dim=1 for 2-D input).
        zmax = jnp.max(z, axis=-1, keepdims=True)
        e = jnp.exp(z - zmax)
        # approx=False keeps full f32 accuracy for the tight reference check.
        o_ref[...] = e * pl.reciprocal(jnp.sum(e, axis=-1, keepdims=True),
                                       approx=False)


# ----------------------------------------------------------------------------
# Tiling helpers
# ----------------------------------------------------------------------------
def _cdiv(a: int, b: int) -> int:
    return -(-a // b)


def _round_up(a: int, m: int) -> int:
    return ((a + m - 1) // m) * m


def _vmem_capacity_bytes() -> int:
    # Generation-aware budget; conservative fallback = v7x per-core (64 MiB).
    try:
        cap = int(pltpu.get_tpu_info().vmem_capacity_bytes)
        if cap > 0:
            return cap
    except Exception:
        pass
    return 64 << 20


def _choose_tiles(B: int, K: int, per_buf_bytes: int):
    LANE, SUB, MIN_ROWS = 128, 8, 64
    # Prefer full-K rows (single reduction step); split K only when a full-K
    # strip of MIN_ROWS rows would not fit the per-buffer budget.
    if K <= LANE or K * 4 * MIN_ROWS <= per_buf_bytes:
        tk = K
    else:
        tk = max(LANE, ((per_buf_bytes // (MIN_ROWS * 4)) // LANE) * LANE)
        if tk >= K:
            tk = K
    # Batch tile from the remaining budget (sublane multiple).
    tb = per_buf_bytes // (tk * 4)
    tb = min(tb, _round_up(B, SUB))
    tb = max(SUB, (tb // SUB) * SUB)
    # Megacore (v7x): keep >= 2 batch steps when the batch is big enough so the
    # "parallel" axis actually shards across both TensorCores.
    if B > SUB and _cdiv(B, tb) < 2:
        tb = max(SUB, _round_up(_cdiv(B, 2), SUB))
    return tb, tk


# ----------------------------------------------------------------------------
# Wrapper
# ----------------------------------------------------------------------------
def pseudo_two_output_svm(x_nchw, w1, b1, w2, b2, tb=None, tk=None):
    """Forward pass of PseudoTwoOutputSVM.

    x_nchw: (B, C, H, W) float32
    w1: (1, K) layer.weight     b1: (1,)  layer.bias
    w2: (2, 1) layer2.weight    b2: (2,)  layer2.bias
    returns: (B, 2) softmax probabilities
    """
    B = int(x_nchw.shape[0])
    K = 1
    for d in x_nchw.shape[1:]:
        K *= int(d)
    x_flat = x_nchw.reshape(B, K).astype(jnp.float32)      # torch.flatten(x, 1)

    # Fold the 255 scale into the weight: (255*x) @ W^T == x @ (255*W)^T.
    # O(K) wrapper-side work vs. an O(B*K) in-kernel multiply.
    w1_scaled = (255.0 * w1.reshape(1, K)).astype(jnp.float32)

    # Tiny layer2/bias params -> one 5-element SMEM scalar vector.
    scalars = jnp.concatenate(
        [b1.reshape(-1), w2.reshape(-1), b2.reshape(-1)]
    ).astype(jnp.float32)                 # [b1, w2_00, w2_10, b2_0, b2_1]

    # No full-batch padding (it would double HBM traffic on a pure-bandwidth
    # kernel). Only a sub-sublane batch gets a tiny pad up to 8 rows; larger
    # batches stream unpadded and the ragged last block's garbage rows are
    # never written back (output shape is exactly (B_run, 2)).
    B_run = B
    if B < 8:
        x_flat = jnp.pad(x_flat, ((0, 8 - B), (0, 0)))
        B_run = 8

    vmem_cap = _vmem_capacity_bytes()
    per_buf = max(1 << 20, min(16 << 20, vmem_cap // 8))
    tb_auto, tk_auto = _choose_tiles(B_run, K, per_buf)
    if tb is None:
        tb = tb_auto
    if tk is None:
        tk = tk_auto

    grid = (_cdiv(B_run, tb), _cdiv(K, tk))     # reduction (K) axis last

    # Explicit VMEM budget: 2x double-buffered x tile + weight tiles + output
    # tiles + accumulator + one extra x tile (possible unfused mul temporary)
    # + headroom. Stays well under 64 MiB physical on v7x and inside the
    # 128 MiB physical on v5e/v6e (overriding the 16/32 MiB scoped defaults).
    x_tile = tb * tk * 4
    vmem_limit = 3 * x_tile + 2 * tk * 4 + 2 * tb * 2 * 4 + tb * 4 + (4 << 20)
    vmem_limit = int(min(vmem_limit, (vmem_cap * 3) // 4))

    cost = pl.CostEstimate(
        flops=2 * B_run * K + 8 * B_run,
        transcendentals=2 * B_run,
        bytes_accessed=B_run * K * 4 + K * 4 + B_run * 2 * 4,
    )

    out = pl.pallas_call(
        functools.partial(_svm_kernel, k_valid=K),
        out_shape=jax.ShapeDtypeStruct((B_run, 2), jnp.float32),
        grid=grid,
        in_specs=[
            pl.BlockSpec((tb, tk), lambda i, k: (i, k)),             # x tiles
            pl.BlockSpec((1, tk), lambda i, k: (0, k)),              # weight
            pl.BlockSpec(memory_space=pltpu.MemorySpace.SMEM),       # 5 scalars
        ],
        out_specs=pl.BlockSpec((tb, 2), lambda i, k: (i, 0)),
        scratch_shapes=[pltpu.VMEM((tb, 1), jnp.float32)],           # logit acc
        compiler_params=pltpu.CompilerParams(
            dimension_semantics=("parallel", "arbitrary"),
            vmem_limit_bytes=vmem_limit,
        ),
        cost_estimate=cost,
    )(x_flat, w1_scaled, scalars)
    # TODO(synk): if profiles ever show a store tail from the (tb, 2) masked
    # stores, emit a lane-dense (2, B) layout instead; output traffic is only
    # 8 bytes/row so this is left as-is.
    return out[:B]


if __name__ == "__main__":
    # Small, deterministic setup. insize = C*H*W = 4*16*16 = 1024.
    B, C, H, W = 2, 4, 16, 16
    K = C * H * W

    key = jax.random.PRNGKey(0)
    kx, kw, kb = jax.random.split(key, 3)

    x = jax.random.uniform(kx, (B, C, H, W), dtype=jnp.float32)

    # TODO(synk): the PyTorch module loads layer.{weight,bias} from a
    # checkpoint; here they are initialized deterministically instead.
    bound = 1.0 / float(K) ** 0.5
    w1 = jax.random.uniform(kw, (1, K), minval=-bound, maxval=bound,
                            dtype=jnp.float32)
    b1 = jax.random.uniform(kb, (1,), minval=-bound, maxval=bound,
                            dtype=jnp.float32)

    # layer2 parameters are hard-coded by LoadMultiOutputSVM:
    w2 = jnp.array([[-1.0], [1.0]], dtype=jnp.float32)   # (2, 1)
    b2 = jnp.array([1.0, 0.0], dtype=jnp.float32)        # (2,)

    out = jax.block_until_ready(pseudo_two_output_svm(x, w1, b1, w2, b2))

    # Pure-JAX reference check.
    x_flat = 255.0 * x.reshape(B, K)
    s_ref = x_flat @ w1.T + b1[None, :]
    z_ref = s_ref @ w2.T + b2[None, :]
    ref = jax.nn.softmax(z_ref, axis=-1)
    assert out.shape == (B, 2)
    assert jnp.allclose(out, ref, atol=1e-4, rtol=1e-4), (out, ref)

    print("KERNEL_OK")
</pallas_src>

<mosaic_0001>
module attributes {stable_mosaic.version = 11 : i64} {
  func.func @_svm_kernel(%arg0: i32, %arg1: i32, %arg2: memref<8x1024xf32, #tpu.memory_space<vmem>>, %arg3: memref<1x1024xf32, #tpu.memory_space<vmem>>, %arg4: memref<5xf32, #tpu.memory_space<smem>>, %arg5: memref<8x2xf32, #tpu.memory_space<vmem>>, %arg6: memref<8x1xf32, #tpu.memory_space<vmem>>) attributes {dimension_semantics = [#tpu.dimension_semantics<parallel>, #tpu.dimension_semantics<arbitrary>], iteration_bounds = array<i64: 1, 1>, scalar_prefetch = 0 : i64, scratch_operands = 1 : i64, tpu.core_type = #tpu.core_type<tc>, window_params = [{transform_indices = @transform_0, window_bounds = array<i64: 8, 1024>}, {transform_indices = @transform_1, window_bounds = array<i64: 1, 1024>}, {transform_indices = @transform_2, window_bounds = array<i64: 5>}, {transform_indices = @transform_3, window_bounds = array<i64: 8, 2>}]} {
    %c0_i32 = arith.constant 0 : i32
    %0 = arith.cmpi eq, %arg1, %c0_i32 : i32
    %1 = arith.extui %0 : i1 to i32
    %c0_i32_0 = arith.constant 0 : i32
    %2 = arith.cmpi ne, %1, %c0_i32_0 : i32
    scf.if %2 {
      %cst_10 = arith.constant 0.000000e+00 : f32
      %15 = vector.broadcast %cst_10 : f32 to vector<8x1xf32>
      %c0_11 = arith.constant 0 : index
      %c0_12 = arith.constant 0 : index
      %16 = vector.load %arg6[%c0_11, %c0_12] : memref<8x1xf32, #tpu.memory_space<vmem>>, vector<8x1xf32>
      tpu.vector_store %arg6[%c0_11, %c0_12], %15 {strides = array<i32>} : memref<8x1xf32, #tpu.memory_space<vmem>>, vector<8x1xf32>,
    } else {
    }
    %c0 = arith.constant 0 : index
    %c0_1 = arith.constant 0 : index
    %3 = vector.load %arg2[%c0, %c0_1] : memref<8x1024xf32, #tpu.memory_space<vmem>>, vector<8x1024xf32>
    %c0_2 = arith.constant 0 : index
    %c0_3 = arith.constant 0 : index
    %4 = vector.load %arg3[%c0_2, %c0_3] : memref<1x1024xf32, #tpu.memory_space<vmem>>, vector<1x1024xf32>
    %5 = vector.broadcast %4 : vector<1x1024xf32> to vector<8x1024xf32>
    %6 = arith.mulf %3, %5 : vector<8x1024xf32>
    %c0_4 = arith.constant 0 : index
    %c0_5 = arith.constant 0 : index
    %7 = vector.load %arg6[%c0_4, %c0_5] : memref<8x1xf32, #tpu.memory_space<vmem>>, vector<8x1xf32>
    %cst = arith.constant dense<0.000000e+00> : vector<8xf32>
    %8 = vector.multi_reduction <add>, %6, %cst [1] : vector<8x1024xf32> to vector<8xf32>
    %9 = vector.shape_cast %8 : vector<8xf32> to vector<8x1xf32>
    %10 = arith.addf %7, %9 : vector<8x1xf32>
    %c0_6 = arith.constant 0 : index
    %c0_7 = arith.constant 0 : index
    %11 = vector.load %arg6[%c0_6, %c0_7] : memref<8x1xf32, #tpu.memory_space<vmem>>, vector<8x1xf32>
    tpu.vector_store %arg6[%c0_6, %c0_7], %10 {strides = array<i32>} : memref<8x1xf32, #tpu.memory_space<vmem>>, vector<8x1xf32>,
    %c0_i32_8 = arith.constant 0 : i32
    %12 = arith.cmpi eq, %arg1, %c0_i32_8 : i32
    %13 = arith.extui %12 : i1 to i32
    %c0_i32_9 = arith.constant 0 : i32
    %14 = arith.cmpi ne, %13, %c0_i32_9 : i32
    scf.if %14 {
      %c0_10 = arith.constant 0 : index
      %c0_11 = arith.constant 0 : index
      %15 = vector.load %arg6[%c0_10, %c0_11] : memref<8x1xf32, #tpu.memory_space<vmem>>, vector<8x1xf32>
      %c0_12 = arith.constant 0 : index
      %16 = memref.load %arg4[%c0_12] : memref<5xf32, #tpu.memory_space<smem>>
      %17 = vector.broadcast %16 : f32 to vector<8x1xf32>
      %18 = arith.addf %15, %17 : vector<8x1xf32>
      %19 = tpu.iota {dimensions = array<i32: 1>} : vector<8x2xi32>
      %c0_i32_13 = arith.constant 0 : i32
      %20 = vector.broadcast %c0_i32_13 : i32 to vector<8x2xi32>
      %21 = arith.cmpi eq, %19, %20 : vector<8x2xi32>
      %c1 = arith.constant 1 : index
      %22 = memref.load %arg4[%c1] : memref<5xf32, #tpu.memory_space<smem>>
      %c2 = arith.constant 2 : index
      %23 = memref.load %arg4[%c2] : memref<5xf32, #tpu.memory_space<smem>>
      %24 = vector.broadcast %22 : f32 to vector<8x2xf32>
      %25 = vector.broadcast %23 : f32 to vector<8x2xf32>
      %26 = arith.select %21, %24, %25 : vector<8x2xi1>, vector<8x2xf32>
      %c0_i32_14 = arith.constant 0 : i32
      %27 = vector.broadcast %c0_i32_14 : i32 to vector<8x2xi32>
      %28 = arith.cmpi eq, %19, %27 : vector<8x2xi32>
      %c3 = arith.constant 3 : index
      %29 = memref.load %arg4[%c3] : memref<5xf32, #tpu.memory_space<smem>>
      %c4 = arith.constant 4 : index
      %30 = memref.load %arg4[%c4] : memref<5xf32, #tpu.memory_space<smem>>
      %31 = vector.broadcast %29 : f32 to vector<8x2xf32>
      %32 = vector.broadcast %30 : f32 to vector<8x2xf32>
      %33 = arith.select %28, %31, %32 : vector<8x2xi1>, vector<8x2xf32>
      %34 = vector.broadcast %18 : vector<8x1xf32> to vector<8x2xf32>
      %35 = arith.mulf %34, %26 : vector<8x2xf32>
      %36 = arith.addf %35, %33 : vector<8x2xf32>
      %cst_15 = arith.constant dense<0xFF800000> : vector<8xf32>
      %37 = vector.multi_reduction <maximumf>, %36, %cst_15 [1] : vector<8x2xf32> to vector<8xf32>
      %38 = vector.shape_cast %37 : vector<8xf32> to vector<8x1xf32>
      %39 = vector.broadcast %38 : vector<8x1xf32> to vector<8x2xf32>
      %40 = arith.subf %36, %39 : vector<8x2xf32>
      %41 = math.exp %40 : vector<8x2xf32>
      %cst_16 = arith.constant dense<0.000000e+00> : vector<8xf32>
      %42 = vector.multi_reduction <add>, %41, %cst_16 [1] : vector<8x2xf32> to vector<8xf32>
      %43 = vector.shape_cast %42 : vector<8xf32> to vector<8x1xf32>
      %44 = tpu.reciprocal %43 : vector<8x1xf32> -> vector<8x1xf32>
      %45 = vector.broadcast %44 : vector<8x1xf32> to vector<8x2xf32>
      %46 = arith.mulf %41, %45 : vector<8x2xf32>
      %c0_17 = arith.constant 0 : index
      %c0_18 = arith.constant 0 : index
      %47 = vector.load %arg5[%c0_17, %c0_18] : memref<8x2xf32, #tpu.memory_space<vmem>>, vector<8x2xf32>
      tpu.vector_store %arg5[%c0_17, %c0_18], %46 {strides = array<i32>} : memref<8x2xf32, #tpu.memory_space<vmem>>, vector<8x2xf32>,
    } else {
    }
    return
  }
  func.func @transform_0(%arg0: i32, %arg1: i32) -> (i32, i32) {
    %c0_i32 = arith.constant 0 : i32
    return %arg0, %arg1 : i32, i32
  }
  func.func @transform_1(%arg0: i32, %arg1: i32) -> (i32, i32) {
    %c0_i32 = arith.constant 0 : i32
    %c0_i32_0 = arith.constant 0 : i32
    return %c0_i32, %arg1 : i32, i32
  }
  func.func @transform_2(%arg0: i32, %arg1: i32) -> i32 {
    %c0_i32 = arith.constant 0 : i32
    %c0_i32_0 = arith.constant 0 : i32
    return %c0_i32 : i32
  }
  func.func @transform_3(%arg0: i32, %arg1: i32) -> (i32, i32) {
    %c0_i32 = arith.constant 0 : i32
    %c0_i32_0 = arith.constant 0 : i32
    return %arg0, %c0_i32 : i32, i32
  }
}

</mosaic_0001>

<llo_original>
// kernel: tpu_custom_call.1
$region0: #{tpu_custom_call.1}
  #allocation0 [shape = 'u32[]', space=smem, size = 0x4, offset = 0x4, fixed_abs, tag = 'smem constant byte address 0x4 - core index']
  #allocation1 [shape = 'u32[144,128]{1,0:T(1,128)}', space=vmem, size = 0x12000, scoped, tag = 'internal scratch']
  #allocation2 [shape = 'f32[8,1]{1,0:T(8,128)}', space=vmem, size = 0x1000, scoped, tag = 'scratch operand']
  %s0 = inlined_call_operand.hbm [shape: f32[8,1024], index: 0, kind: input, shape index: {}]
  %s1 = inlined_call_operand.hbm [shape: f32[1,1024], index: 1, kind: input, shape index: {}]
  %s2 = inlined_call_operand.vmem [shape: f32[5], index: 2, kind: input, shape index: {}]
  %s3 = inlined_call_operand.vmem [shape: f32[8,2], index: 3, kind: output, shape index: {}]
  %s4 = sld [smem:[#allocation0]]
  $region42: #{tpu_custom_call.1} parent=0
    _
  %s6 = ssub.s32 1, %s4
  %s7 = scalar_select 0, %s6, %s4
  $region1: #{tpu_custom_call.1} parent=0
    #allocation3 [shape = 'u8[32768]{0}', space=vmem, size = 0x8000, scoped, tag = 'input window, operand 0, single buffered']
    #allocation4 [shape = 's32[1]{0}', space=sflag, size = 0x4, scoped, tag = 'scoped memory for tpu_custom_call.1']
    #allocation5 [shape = 's32[1]{0}', space=sflag, size = 0x4, scoped, tag = 'scoped memory for tpu_custom_call.1']
    #allocation6 [shape = 'u8[4096]{0}', space=vmem, size = 0x1000, scoped, tag = 'input window, operand 1, single buffered']
    #allocation7 [shape = 's32[1]{0}', space=sflag, size = 0x4, scoped, tag = 'scoped memory for tpu_custom_call.1']
    #allocation8 [shape = 'u8[512]{0}', space=smem, size = 0x200, scoped, tag = 'input window, operand 2, single buffered']
    %8 = vsyncpa [#allocation4], 0
    %9 = vsyncpa [#allocation7], 0
    %10 = vsyncpa [#allocation5], 0
    // Predicated region
    $region2: #{tpu_custom_call.1} parent=1 // pred_check
      _
    $region3: #{tpu_custom_call.1} parent=1 // pred_check_branch
      %12 = sbr.rel (0) target = $region5
    $region4: #{tpu_custom_call.1} parent=1 // pred_region
      %s14 = ssub.s32 1024, 1024
      %15 = vsyncadd [#allocation4], %s14
      %s17 = sshll.u32 [#allocation3], 4
      %s18 = int_to_ptr.vmem [resolvable:$true] %s17
      %20 = dma.hbm_to_vmem [thread:$0]  %s0, 1024, %s18, [#allocation4]
    $region5: #{tpu_custom_call.1} parent=1 // pred_fallthru
      _
    // Predicated region
    $region6: #{tpu_custom_call.1} parent=1 // pred_check
      _
    $region7: #{tpu_custom_call.1} parent=1 // pred_check_branch
      %22 = sbr.rel (0) target = $region9
    $region8: #{tpu_custom_call.1} parent=1 // pred_region
      %s24 = ssub.s32 128, 128
      %25 = vsyncadd [#allocation7], %s24
      %s27 = sshll.u32 [#allocation6], 4
      %s28 = int_to_ptr.vmem [resolvable:$true] %s27
      %30 = dma.hbm_to_vmem [thread:$0]  %s1, 128, %s28, [#allocation7]
    $region9: #{tpu_custom_call.1} parent=1 // pred_fallthru
      _
    // Predicated region
    $region10: #{tpu_custom_call.1} parent=1 // pred_check
      _
    $region11: #{tpu_custom_call.1} parent=1 // pred_check_branch
      %32 = sbr.rel (0) target = $region13
    $region12: #{tpu_custom_call.1} parent=1 // pred_region
      %s34 = ssub.s32 16, 16
      %35 = vsyncadd [#allocation5], %s34
      %s37 = sshll.u32 %s2, 4
      %s38 = int_to_ptr.vmem [resolvable:$true] %s37
      %40 = dma.vmem_to_smem %s38, 16, [#allocation8], [#allocation5]
    $region13: #{tpu_custom_call.1} parent=1 // pred_fallthru
      _
    // Predicated region
    $region14: #{tpu_custom_call.1} parent=1 // pred_check
      _
    $region15: #{tpu_custom_call.1} parent=1 // pred_check_branch
      %42 = sbr.rel (0) target = $region17
    $region16: #{tpu_custom_call.1} parent=1 // pred_region
      %43 = dma.done [#allocation4], 1024
    $region17: #{tpu_custom_call.1} parent=1 // pred_fallthru
      _
    // Predicated region
    $region18: #{tpu_custom_call.1} parent=1 // pred_check
      _
    $region19: #{tpu_custom_call.1} parent=1 // pred_check_branch
      %45 = sbr.rel (0) target = $region21
    $region20: #{tpu_custom_call.1} parent=1 // pred_region
      %46 = dma.done [#allocation7], 128
    $region21: #{tpu_custom_call.1} parent=1 // pred_fallthru
      _
    // Predicated region
    $region22: #{tpu_custom_call.1} parent=1 // pred_check
      _
    $region23: #{tpu_custom_call.1} parent=1 // pred_check_branch
      %48 = sbr.rel (0) target = $region25
    $region24: #{tpu_custom_call.1} parent=1 // pred_region
      %49 = dma.done [#allocation5], 16
    $region25: #{tpu_custom_call.1} parent=1 // pred_fallthru
      _
    %50 = sfence
    %p51 = scmp.eq.s32.totalorder 0, 0
    // Predicated region
    $region26: #{tpu_custom_call.1} parent=1 // pred_check
      %p52 = pneg %p51
    $region27: #{tpu_custom_call.1} parent=1 // pred_check_branch
      %54 = sbr.rel (%p52) target = $region29
    $region28: #{tpu_custom_call.1} parent=1 // pred_region
      %vm55 = vcmask 7168
      %56 = vst.msk [vmem:[#allocation2] sm:$0xff] %vm55, 0.0
    $region29: #{tpu_custom_call.1} parent=1 // pred_fallthru
      _
    %v57 = vld [vmem:[#allocation3] sm:$0xff]
    %v58 = vld [vmem:[#allocation3 + $0x8] sm:$0xff]
    %v59 = vld [vmem:[#allocation3 + $0x10] sm:$0xff]
    %v60 = vld [vmem:[#allocation3 + $0x18] sm:$0xff]
    %v61 = vld [vmem:[#allocation3 + $0x20] sm:$0xff]
    %v62 = vld [vmem:[#allocation3 + $0x28] sm:$0xff]
    %v63 = vld [vmem:[#allocation3 + $0x30] sm:$0xff]
    %v64 = vld [vmem:[#allocation3 + $0x38] sm:$0xff]
    %v65 = vld [vmem:[#allocation6] sm:$0xff]
    %v67 = vlaneseq
    %v68 = vshrl.u32 %v67, 7
    %v69 = vsub.s32 0, %v68
    %v70 = vrot.slane %v65, %v69
    %v71 = vlaneseq
    %v72 = vshrl.u32 %v71, 7
    %v73 = vsub.s32 1, %v72
    %v74 = vrot.slane %v65, %v73
    %v75 = vlaneseq
    %v76 = vshrl.u32 %v75, 7
    %v77 = vsub.s32 2, %v76
    %v78 = vrot.slane %v65, %v77
    %v79 = vlaneseq
    %v80 = vshrl.u32 %v79, 7
    %v81 = vsub.s32 3, %v80
    %v82 = vrot.slane %v65, %v81
    %v83 = vlaneseq
    %v84 = vshrl.u32 %v83, 7
    %v85 = vsub.s32 4, %v84
    %v86 = vrot.slane %v65, %v85
    %v87 = vlaneseq
    %v88 = vshrl.u32 %v87, 7
    %v89 = vsub.s32 5, %v88
    %v90 = vrot.slane %v65, %v89
    %v91 = vlaneseq
    %v92 = vshrl.u32 %v91, 7
    %v93 = vsub.s32 6, %v92
    %v94 = vrot.slane %v65, %v93
    %v95 = vlaneseq
    %v96 = vshrl.u32 %v95, 7
    %v97 = vsub.s32 7, %v96
    %v98 = vrot.slane %v65, %v97
    %v107 = vmul.f32 %v57, %v70
    %v108 = vmul.f32 %v58, %v74
    %v109 = vmul.f32 %v59, %v78
    %v110 = vmul.f32 %v60, %v82
    %v111 = vmul.f32 %v61, %v86
    %v112 = vmul.f32 %v62, %v90
    %v113 = vmul.f32 %v63, %v94
    %v114 = vmul.f32 %v64, %v98
    %v115 = vld [vmem:[#allocation2] sm:$0xff]
    %v116 = vadd.f32 %v107, %v108
    %v117 = vadd.f32 %v116, %v109
    %v118 = vadd.f32 %v117, %v110
    %v119 = vadd.f32 %v118, %v111
    %v120 = vadd.f32 %v119, %v112
    %v121 = vadd.f32 %v120, %v113
    %v122 = vadd.f32 %v121, %v114
    %123 = vadd.xlane.f32.xlu0 %v122
    %v124 = vpop.xlane.xlu0 %123
    %v125 = vadd.f32 %v115, %v124
    %vm126 = vcmask 7168
    %127 = vst.msk [vmem:[#allocation2] sm:$0xff] %vm126, %v125
    // Predicated region
    $region30: #{tpu_custom_call.1} parent=1 // pred_check
      %p128 = pneg %p51
    $region31: #{tpu_custom_call.1} parent=1 // pred_check_branch
      %130 = sbr.rel (%p128) target = $region33
    $region32: #{tpu_custom_call.1} parent=1 // pred_region
      %v131 = vld [vmem:[#allocation2] sm:$0xff]
      %s132 = sld [smem:[#allocation8]]
      %v133 = vstv %s132
      %v134 = vadd.f32 %v131, %v133
      %v135 = vlaneseq
      %v136 = vand.u32 %v135, 127
      %vm137 = vcmp.eq.s32.totalorder %v136, 0
      %s138 = sld [smem:[#allocation8 + $0x1]]
      %s139 = sld [smem:[#allocation8 + $0x2]]
      %v140 = vstv %s138
      %v141 = vstv %s139
      %v142 = vsel %vm137, %v140, %v141
      %s143 = sld [smem:[#allocation8 + $0x3]]
      %s144 = sld [smem:[#allocation8 + $0x4]]
      %v145 = vstv %s143
      %v146 = vstv %s144
      %v147 = vsel %vm137, %v145, %v146
      %149 = vset.pattern.permute.xlu0 0
      %150 = vperm.xlu0 %149, %v134
      %v151 = vpop.permute.xlu0 %150
      %v153 = vmul.f32 %v151, %v142
      %v154 = vadd.f32 %v153, %v147
      %vm155 = vcmask 15360
      %v156 = vsel %vm155, %v154, -inf
      %157 = vmax.xlane.f32.xlu0 %v156
      %v158 = vpop.xlane.xlu0 %157
      %v159 = vsub.f32 %v154, %v158
      %v160 = vmul.f32 %v159, 1.442695
      %v161 = vpow.pop %v160
      %v162 = vsel %vm155, %v161, 0.0
      %163 = vadd.xlane.f32.xlu0 %v162
      %v164 = vpop.xlane.xlu0 %163
      %v165 = vrcp.pop %v164
      %v166 = vmul.f32 %v161, %v165
      %167 = vst.msk [vmem:[%s3] sm:$0xff] %vm155, %v166
    $region33: #{tpu_custom_call.1} parent=1 // pred_fallthru
      _
    // Predicated region
    $region34: #{tpu_custom_call.1} parent=1 // pred_check
      _
    $region35: #{tpu_custom_call.1} parent=1 // pred_check_branch
      %169 = sbr.rel (0) target = $region37
    $region36: #{tpu_custom_call.1} parent=1 // pred_region
      _
    $region37: #{tpu_custom_call.1} parent=1 // pred_fallthru
      _
    // Predicated region
    $region38: #{tpu_custom_call.1} parent=1 // pred_check
      _
    $region39: #{tpu_custom_call.1} parent=1 // pred_check_branch
      %171 = sbr.rel (0) target = $region41
    $region40: #{tpu_custom_call.1} parent=1 // pred_region
      _
    $region41: #{tpu_custom_call.1} parent=1 // pred_fallthru
      _
    %172 = vsyncpa [#allocation4], 1
    %173 = vsyncpa [#allocation7], 1
    %174 = vsyncpa [#allocation5], 1

</llo_original>
